<compile_context>
chip_gen: v6e
topology: v6e:2x2x1
jax: 0.10.0
libtpu: 0.0.40
codegen_flags: <defaults>
</compile_context>

<pallas_src>
import jax
import jax.numpy as jnp
from jax.experimental import pallas as pl
from jax.experimental.pallas import tpu as pltpu

# ---- model dims (consistent with the module) --------------------------------
LAYERS = [32, 64, 64, 64, 16]
IN = LAYERS[0]            # 32
HID = 64                  # hidden width (all hidden layers)
OUT = LAYERS[-1]          # 16
BATCH = 16

MAX_PACKED_TILE = 2048    # packed rows per grid step (= 4096 batch rows); v5e-VMEM safe
SPLIT_PACKED_ROWS = 256   # force >= 2 parallel tiles above this (v7x megacore)


def _round_up(n, m):
    return ((n + m - 1) // m) * m


def mlp_skip_kernel(x_ref, w_ref, b_ref, o_ref):
    # x_ref: (tile, 64) f32   -- two batch halves side by side in lanes:
    #                            cols [0:32) = half-0 features, [32:64) = half-1
    # w_ref: (4, 128, 128) bf16 block-diagonally packed weights (VMEM resident)
    # b_ref: (4, 1, 128) f32  duplicated biases (VMEM resident)
    # o_ref: (tile, 32) f32   -- cols [0:16) = half-0 outputs, [16:32) = half-1
    x = x_ref[...].astype(jnp.bfloat16)

    # block 0: 2 x (32 -> 64), ReLU, no residual (widths differ)
    h = jnp.dot(x, w_ref[0, :2 * IN, :],
                preferred_element_type=jnp.float32) + b_ref[0]
    h = jnp.maximum(h, 0.0)

    # block 1: 2 x (64 -> 64), ReLU, + skip
    r = h
    h = jnp.dot(h.astype(jnp.bfloat16), w_ref[1],
                preferred_element_type=jnp.float32) + b_ref[1]
    h = jnp.maximum(h, 0.0) + r

    # block 2: 2 x (64 -> 64), ReLU, + skip
    r = h
    h = jnp.dot(h.astype(jnp.bfloat16), w_ref[2],
                preferred_element_type=jnp.float32) + b_ref[2]
    h = jnp.maximum(h, 0.0) + r

    # output layer: 2 x (64 -> 16), Identity; both halves land in lanes [0:32)
    y = jnp.dot(h.astype(jnp.bfloat16), w_ref[3],
                preferred_element_type=jnp.float32) + b_ref[3]
    o_ref[...] = y[:, :2 * OUT].astype(o_ref.dtype)


def pack_params(params):
    """Block-diagonal 2x packing of all layer weights/biases.

    Each layer's weight is placed twice inside a (128,128) bf16 slab so a
    single matmul processes two batch halves laid side by side in the lanes.
      * layer 0 (32->64): half-1 block starts at input row 32 (packed x holds
        half-1 features in cols [32:64)) and output col 64.
      * hidden layers (64->64): standard blockdiag(W, W) at offset 64.
      * output layer (64->16): half-1 output block at col 16, so the packed
        result is a compact (tile, 32) store.
    Biases are duplicated at the matching column offsets (f32 for VPU adds).
    """
    n = len(params)
    wpack = jnp.zeros((n, 2 * HID, 2 * HID), dtype=jnp.bfloat16)
    bpack = jnp.zeros((n, 1, 2 * HID), dtype=jnp.float32)
    for i, (w, b) in enumerate(params):
        fin, fout = w.shape
        wb = w.astype(jnp.bfloat16)
        bf = b.astype(jnp.float32)
        row_off = fin if i == 0 else HID
        col_off = HID if i < n - 1 else fout
        wpack = wpack.at[i, :fin, :fout].set(wb)
        wpack = wpack.at[i, row_off:row_off + fin, col_off:col_off + fout].set(wb)
        bpack = bpack.at[i, 0, :fout].set(bf)
        bpack = bpack.at[i, 0, col_off:col_off + fout].set(bf)
    return wpack, bpack


def mlp_skip_forward(x, wpack, bpack, *, max_packed_tile=MAX_PACKED_TILE):
    """x: (B, 32) f32; wpack: (4,128,128) bf16; bpack: (4,1,128) f32 -> (B, 16)."""
    B = x.shape[0]

    # ---- choose the packed-row tiling (1 packed row = 2 batch rows) ---------
    half = -(-B // 2)                                      # packed rows needed
    th = min(_round_up(max(half, 8), 8), max_packed_tile)  # multiple of 8 sublanes
    n_tiles = -(-half // th)
    if n_tiles == 1 and half >= SPLIT_PACKED_ROWS:
        # v7x has 2 TensorCores and "parallel" grid axes shard across them:
        # always emit >= 2 tiles once there is enough work per tile.
        n_tiles = 2
        th = _round_up(-(-half // 2), 8)
    hp = n_tiles * th                                      # padded packed rows
    bp = 2 * hp                                            # padded batch

    # ---- pack the batch: two halves side by side in the lane dimension ------
    x_pad = jnp.pad(x, ((0, bp - B), (0, 0)))
    xp = jnp.concatenate([x_pad[:hp], x_pad[hp:]], axis=1)          # (hp, 64)

    grid = (n_tiles,)
    dims = ("parallel",) if n_tiles > 1 else ("arbitrary",)

    def run(single_buffer_resident):
        res = ({"pipeline_mode": pl.Buffered(1)} if single_buffer_resident else {})
        return pl.pallas_call(
            mlp_skip_kernel,
            out_shape=jax.ShapeDtypeStruct((hp, 2 * OUT), x.dtype),
            grid_spec=pltpu.PrefetchScalarGridSpec(
                num_scalar_prefetch=0,
                grid=grid,
                in_specs=[
                    pl.BlockSpec((th, 2 * IN), lambda i: (i, 0)),
                    pl.BlockSpec(wpack.shape, lambda i: (0, 0, 0), **res),  # resident
                    pl.BlockSpec(bpack.shape, lambda i: (0, 0, 0), **res),  # resident
                ],
                out_specs=pl.BlockSpec((th, 2 * OUT), lambda i: (i, 0)),
            ),
            compiler_params=pltpu.CompilerParams(dimension_semantics=dims),
        )(xp, wpack, bpack)

    try:
        # Constant-index weight/bias blocks don't need a second pipeline buffer.
        slab = run(True)
    except Exception:
        # Older pallas builds may reject pipeline_mode; the cost of the default
        # double buffer is only ~144 KiB of VMEM + one prologue DMA.
        slab = run(False)

    # ---- unpack: (hp, 32) slab -> (B, 16) ------------------------------------
    out = jnp.concatenate([slab[:, :OUT], slab[:, OUT:2 * OUT]], axis=0)
    return out[:B]


def init_params(key):
    """Deterministic synthetic parameters (W stored as (in, out))."""
    params = []
    for i in range(len(LAYERS) - 1):
        key, kw, kb = jax.random.split(key, 3)
        fan_in = LAYERS[i]
        bound = 1.0 / jnp.sqrt(fan_in)
        w = jax.random.uniform(kw, (LAYERS[i], LAYERS[i + 1]),
                               minval=-bound, maxval=bound, dtype=jnp.float32)
        b = jax.random.uniform(kb, (LAYERS[i + 1],),
                               minval=-bound, maxval=bound, dtype=jnp.float32)
        params.append((w, b))
    return params


def mlp_skip_ref(x, params, bf16_matmul=False):
    """Pure-JAX reference mirroring the PyTorch forward exactly."""
    def mm(a, w):
        if bf16_matmul:
            return jnp.dot(a.astype(jnp.bfloat16), w.astype(jnp.bfloat16),
                           preferred_element_type=jnp.float32)
        return a @ w

    residuals = []
    n_blocks = len(LAYERS) - 2
    h = x
    for i in range(n_blocks):
        w, b = params[i]
        if h.shape[1] == w.shape[1]:
            residuals.append(h)
        h = jnp.maximum(mm(h, w) + b, 0.0)
        if residuals and h.shape[1] == residuals[-1].shape[1]:
            h = h + residuals.pop()
    w, b = params[-1]
    return mm(h, w) + b  # Identity output activation


if __name__ == "__main__":
    key = jax.random.PRNGKey(0)
    key, kx = jax.random.split(key)
    x = jax.random.normal(kx, (BATCH, LAYERS[0]), dtype=jnp.float32)

    params = init_params(key)
    wpack, bpack = pack_params(params)

    out = jax.block_until_ready(mlp_skip_forward(x, wpack, bpack))

    ref_bf16 = mlp_skip_ref(x, params, bf16_matmul=True)   # mirrors kernel casts
    ref_f32 = mlp_skip_ref(x, params, bf16_matmul=False)   # full-precision sanity

    assert out.shape == (BATCH, LAYERS[-1])
    assert jnp.allclose(out, ref_bf16, atol=1e-3, rtol=1e-3), "mismatch vs bf16 reference"
    assert jnp.allclose(out, ref_f32, atol=5e-2, rtol=5e-2), "mismatch vs f32 reference"

    print("KERNEL_OK")
</pallas_src>

<mosaic_0001>
module attributes {stable_mosaic.version = 11 : i64} {
  func.func @mlp_skip_kernel(%arg0: i32, %arg1: memref<8x64xf32, #tpu.memory_space<vmem>>, %arg2: memref<4x128x128xbf16, #tpu.memory_space<vmem>>, %arg3: memref<4x1x128xf32, #tpu.memory_space<vmem>>, %arg4: memref<8x32xf32, #tpu.memory_space<vmem>>) attributes {dimension_semantics = [#tpu.dimension_semantics<arbitrary>], iteration_bounds = array<i64: 1>, scalar_prefetch = 0 : i64, scratch_operands = 0 : i64, tpu.core_type = #tpu.core_type<tc>, window_params = [{transform_indices = @transform_0, window_bounds = array<i64: 8, 64>}, {pipeline_mode = #tpu.pipeline_mode<synchronous>, transform_indices = @transform_1, window_bounds = array<i64: 4, 128, 128>}, {pipeline_mode = #tpu.pipeline_mode<synchronous>, transform_indices = @transform_2, window_bounds = array<i64: 4, 1, 128>}, {transform_indices = @transform_3, window_bounds = array<i64: 8, 32>}]} {
    %c0 = arith.constant 0 : index
    %c0_0 = arith.constant 0 : index
    %0 = vector.load %arg1[%c0, %c0_0] : memref<8x64xf32, #tpu.memory_space<vmem>>, vector<8x64xf32>
    %1 = arith.truncf %0 : vector<8x64xf32> to vector<8x64xbf16>
    %c0_1 = arith.constant 0 : index
    %c0_2 = arith.constant 0 : index
    %c0_3 = arith.constant 0 : index
    %2 = vector.load %arg2[%c0_1, %c0_2, %c0_3] : memref<4x128x128xbf16, #tpu.memory_space<vmem>>, vector<1x64x128xbf16>
    %3 = vector.shape_cast %2 : vector<1x64x128xbf16> to vector<64x128xbf16>
    %cst = arith.constant dense<0.000000e+00> : vector<8x128xf32>
    %4 = tpu.matmul %1, %3, %cst {dimension_numbers = #tpu.dot_dimension_numbers<[1], [0], [0], [1], [0, 0, 1, 1], [], []>} : vector<8x64xbf16>, vector<64x128xbf16>, vector<8x128xf32> -> vector<8x128xf32>
    %c0_4 = arith.constant 0 : index
    %c0_5 = arith.constant 0 : index
    %c0_6 = arith.constant 0 : index
    %5 = vector.load %arg3[%c0_4, %c0_5, %c0_6] : memref<4x1x128xf32, #tpu.memory_space<vmem>>, vector<1x1x128xf32>
    %6 = vector.shape_cast %5 : vector<1x1x128xf32> to vector<1x128xf32>
    %7 = vector.broadcast %6 : vector<1x128xf32> to vector<8x128xf32>
    %8 = arith.addf %4, %7 : vector<8x128xf32>
    %cst_7 = arith.constant 0.000000e+00 : f32
    %9 = vector.broadcast %cst_7 : f32 to vector<8x128xf32>
    %10 = arith.maximumf %8, %9 : vector<8x128xf32>
    %11 = arith.truncf %10 : vector<8x128xf32> to vector<8x128xbf16>
    %c1 = arith.constant 1 : index
    %c0_8 = arith.constant 0 : index
    %c0_9 = arith.constant 0 : index
    %12 = vector.load %arg2[%c1, %c0_8, %c0_9] : memref<4x128x128xbf16, #tpu.memory_space<vmem>>, vector<1x128x128xbf16>
    %13 = vector.shape_cast %12 : vector<1x128x128xbf16> to vector<128x128xbf16>
    %cst_10 = arith.constant dense<0.000000e+00> : vector<8x128xf32>
    %14 = tpu.matmul %11, %13, %cst_10 {dimension_numbers = #tpu.dot_dimension_numbers<[1], [0], [0], [1], [0, 0, 1, 1], [], []>} : vector<8x128xbf16>, vector<128x128xbf16>, vector<8x128xf32> -> vector<8x128xf32>
    %c1_11 = arith.constant 1 : index
    %c0_12 = arith.constant 0 : index
    %c0_13 = arith.constant 0 : index
    %15 = vector.load %arg3[%c1_11, %c0_12, %c0_13] : memref<4x1x128xf32, #tpu.memory_space<vmem>>, vector<1x1x128xf32>
    %16 = vector.shape_cast %15 : vector<1x1x128xf32> to vector<1x128xf32>
    %17 = vector.broadcast %16 : vector<1x128xf32> to vector<8x128xf32>
    %18 = arith.addf %14, %17 : vector<8x128xf32>
    %cst_14 = arith.constant 0.000000e+00 : f32
    %19 = vector.broadcast %cst_14 : f32 to vector<8x128xf32>
    %20 = arith.maximumf %18, %19 : vector<8x128xf32>
    %21 = arith.addf %20, %10 : vector<8x128xf32>
    %22 = arith.truncf %21 : vector<8x128xf32> to vector<8x128xbf16>
    %c2 = arith.constant 2 : index
    %c0_15 = arith.constant 0 : index
    %c0_16 = arith.constant 0 : index
    %23 = vector.load %arg2[%c2, %c0_15, %c0_16] : memref<4x128x128xbf16, #tpu.memory_space<vmem>>, vector<1x128x128xbf16>
    %24 = vector.shape_cast %23 : vector<1x128x128xbf16> to vector<128x128xbf16>
    %cst_17 = arith.constant dense<0.000000e+00> : vector<8x128xf32>
    %25 = tpu.matmul %22, %24, %cst_17 {dimension_numbers = #tpu.dot_dimension_numbers<[1], [0], [0], [1], [0, 0, 1, 1], [], []>} : vector<8x128xbf16>, vector<128x128xbf16>, vector<8x128xf32> -> vector<8x128xf32>
    %c2_18 = arith.constant 2 : index
    %c0_19 = arith.constant 0 : index
    %c0_20 = arith.constant 0 : index
    %26 = vector.load %arg3[%c2_18, %c0_19, %c0_20] : memref<4x1x128xf32, #tpu.memory_space<vmem>>, vector<1x1x128xf32>
    %27 = vector.shape_cast %26 : vector<1x1x128xf32> to vector<1x128xf32>
    %28 = vector.broadcast %27 : vector<1x128xf32> to vector<8x128xf32>
    %29 = arith.addf %25, %28 : vector<8x128xf32>
    %cst_21 = arith.constant 0.000000e+00 : f32
    %30 = vector.broadcast %cst_21 : f32 to vector<8x128xf32>
    %31 = arith.maximumf %29, %30 : vector<8x128xf32>
    %32 = arith.addf %31, %21 : vector<8x128xf32>
    %33 = arith.truncf %32 : vector<8x128xf32> to vector<8x128xbf16>
    %c3 = arith.constant 3 : index
    %c0_22 = arith.constant 0 : index
    %c0_23 = arith.constant 0 : index
    %34 = vector.load %arg2[%c3, %c0_22, %c0_23] : memref<4x128x128xbf16, #tpu.memory_space<vmem>>, vector<1x128x128xbf16>
    %35 = vector.shape_cast %34 : vector<1x128x128xbf16> to vector<128x128xbf16>
    %cst_24 = arith.constant dense<0.000000e+00> : vector<8x128xf32>
    %36 = tpu.matmul %33, %35, %cst_24 {dimension_numbers = #tpu.dot_dimension_numbers<[1], [0], [0], [1], [0, 0, 1, 1], [], []>} : vector<8x128xbf16>, vector<128x128xbf16>, vector<8x128xf32> -> vector<8x128xf32>
    %c3_25 = arith.constant 3 : index
    %c0_26 = arith.constant 0 : index
    %c0_27 = arith.constant 0 : index
    %37 = vector.load %arg3[%c3_25, %c0_26, %c0_27] : memref<4x1x128xf32, #tpu.memory_space<vmem>>, vector<1x1x128xf32>
    %38 = vector.shape_cast %37 : vector<1x1x128xf32> to vector<1x128xf32>
    %39 = vector.broadcast %38 : vector<1x128xf32> to vector<8x128xf32>
    %40 = arith.addf %36, %39 : vector<8x128xf32>
    %41 = vector.extract_strided_slice %40 {offsets = [0, 0], sizes = [8, 32], strides = [1, 1]} : vector<8x128xf32> to vector<8x32xf32>
    %c0_28 = arith.constant 0 : index
    %c0_29 = arith.constant 0 : index
    %42 = vector.load %arg4[%c0_28, %c0_29] : memref<8x32xf32, #tpu.memory_space<vmem>>, vector<8x32xf32>
    tpu.vector_store %arg4[%c0_28, %c0_29], %41 {strides = array<i32>} : memref<8x32xf32, #tpu.memory_space<vmem>>, vector<8x32xf32>,
    return
  }
  func.func @transform_0(%arg0: i32) -> (i32, i32) {
    %c0_i32 = arith.constant 0 : i32
    %c0_i32_0 = arith.constant 0 : i32
    return %arg0, %c0_i32 : i32, i32
  }
  func.func @transform_1(%arg0: i32) -> (i32, i32, i32) {
    %c0_i32 = arith.constant 0 : i32
    %c0_i32_0 = arith.constant 0 : i32
    %c0_i32_1 = arith.constant 0 : i32
    %c0_i32_2 = arith.constant 0 : i32
    return %c0_i32, %c0_i32_0, %c0_i32_1 : i32, i32, i32
  }
  func.func @transform_2(%arg0: i32) -> (i32, i32, i32) {
    %c0_i32 = arith.constant 0 : i32
    %c0_i32_0 = arith.constant 0 : i32
    %c0_i32_1 = arith.constant 0 : i32
    %c0_i32_2 = arith.constant 0 : i32
    return %c0_i32, %c0_i32_0, %c0_i32_1 : i32, i32, i32
  }
  func.func @transform_3(%arg0: i32) -> (i32, i32) {
    %c0_i32 = arith.constant 0 : i32
    %c0_i32_0 = arith.constant 0 : i32
    return %arg0, %c0_i32 : i32, i32
  }
}

module attributes {stable_mosaic.version = 11 : i64} {
  func.func @mlp_skip_kernel(%arg0: i32, %arg1: memref<8x64xf32, #tpu.memory_space<vmem>>, %arg2: memref<4x128x128xbf16, #tpu.memory_space<vmem>>, %arg3: memref<4x1x128xf32, #tpu.memory_space<vmem>>, %arg4: memref<8x32xf32, #tpu.memory_space<vmem>>) attributes {dimension_semantics = [#tpu.dimension_semantics<arbitrary>], iteration_bounds = array<i64: 1>, scalar_prefetch = 0 : i64, scratch_operands = 0 : i64, tpu.core_type = #tpu.core_type<tc>, window_params = [{transform_indices = @transform_0, window_bounds = array<i64: 8, 64>}, {pipeline_mode = #tpu.pipeline_mode<synchronous>, transform_indices = @transform_1, window_bounds = array<i64: 4, 128, 128>}, {pipeline_mode = #tpu.pipeline_mode<synchronous>, transform_indices = @transform_2, window_bounds = array<i64: 4, 1, 128>}, {transform_indices = @transform_3, window_bounds = array<i64: 8, 32>}]} {
    %c0 = arith.constant 0 : index
    %c0_0 = arith.constant 0 : index
    %0 = vector.load %arg1[%c0, %c0_0] : memref<8x64xf32, #tpu.memory_space<vmem>>, vector<8x64xf32>
    %1 = arith.truncf %0 : vector<8x64xf32> to vector<8x64xbf16>
    %c0_1 = arith.constant 0 : index
    %c0_2 = arith.constant 0 : index
    %c0_3 = arith.constant 0 : index
    %2 = vector.load %arg2[%c0_1, %c0_2, %c0_3] : memref<4x128x128xbf16, #tpu.memory_space<vmem>>, vector<1x64x128xbf16>
    %3 = vector.shape_cast %2 : vector<1x64x128xbf16> to vector<64x128xbf16>
    %cst = arith.constant dense<0.000000e+00> : vector<8x128xf32>
    %4 = tpu.matmul %1, %3, %cst {dimension_numbers = #tpu.dot_dimension_numbers<[1], [0], [0], [1], [0, 0, 1, 1], [], []>} : vector<8x64xbf16>, vector<64x128xbf16>, vector<8x128xf32> -> vector<8x128xf32>
    %c0_4 = arith.constant 0 : index
    %c0_5 = arith.constant 0 : index
    %c0_6 = arith.constant 0 : index
    %5 = vector.load %arg3[%c0_4, %c0_5, %c0_6] : memref<4x1x128xf32, #tpu.memory_space<vmem>>, vector<1x1x128xf32>
    %6 = vector.shape_cast %5 : vector<1x1x128xf32> to vector<1x128xf32>
    %7 = vector.broadcast %6 : vector<1x128xf32> to vector<8x128xf32>
    %8 = arith.addf %4, %7 : vector<8x128xf32>
    %cst_7 = arith.constant 0.000000e+00 : f32
    %9 = vector.broadcast %cst_7 : f32 to vector<8x128xf32>
    %10 = arith.maximumf %8, %9 : vector<8x128xf32>
    %11 = arith.truncf %10 : vector<8x128xf32> to vector<8x128xbf16>
    %c1 = arith.constant 1 : index
    %c0_8 = arith.constant 0 : index
    %c0_9 = arith.constant 0 : index
    %12 = vector.load %arg2[%c1, %c0_8, %c0_9] : memref<4x128x128xbf16, #tpu.memory_space<vmem>>, vector<1x128x128xbf16>
    %13 = vector.shape_cast %12 : vector<1x128x128xbf16> to vector<128x128xbf16>
    %cst_10 = arith.constant dense<0.000000e+00> : vector<8x128xf32>
    %14 = tpu.matmul %11, %13, %cst_10 {dimension_numbers = #tpu.dot_dimension_numbers<[1], [0], [0], [1], [0, 0, 1, 1], [], []>} : vector<8x128xbf16>, vector<128x128xbf16>, vector<8x128xf32> -> vector<8x128xf32>
    %c1_11 = arith.constant 1 : index
    %c0_12 = arith.constant 0 : index
    %c0_13 = arith.constant 0 : index
    %15 = vector.load %arg3[%c1_11, %c0_12, %c0_13] : memref<4x1x128xf32, #tpu.memory_space<vmem>>, vector<1x1x128xf32>
    %16 = vector.shape_cast %15 : vector<1x1x128xf32> to vector<1x128xf32>
    %17 = vector.broadcast %16 : vector<1x128xf32> to vector<8x128xf32>
    %18 = arith.addf %14, %17 : vector<8x128xf32>
    %cst_14 = arith.constant 0.000000e+00 : f32
    %19 = vector.broadcast %cst_14 : f32 to vector<8x128xf32>
    %20 = arith.maximumf %18, %19 : vector<8x128xf32>
    %21 = arith.addf %20, %10 : vector<8x128xf32>
    %22 = arith.truncf %21 : vector<8x128xf32> to vector<8x128xbf16>
    %c2 = arith.constant 2 : index
    %c0_15 = arith.constant 0 : index
    %c0_16 = arith.constant 0 : index
    %23 = vector.load %arg2[%c2, %c0_15, %c0_16] : memref<4x128x128xbf16, #tpu.memory_space<vmem>>, vector<1x128x128xbf16>
    %24 = vector.shape_cast %23 : vector<1x128x128xbf16> to vector<128x128xbf16>
    %cst_17 = arith.constant dense<0.000000e+00> : vector<8x128xf32>
    %25 = tpu.matmul %22, %24, %cst_17 {dimension_numbers = #tpu.dot_dimension_numbers<[1], [0], [0], [1], [0, 0, 1, 1], [], []>} : vector<8x128xbf16>, vector<128x128xbf16>, vector<8x128xf32> -> vector<8x128xf32>
    %c2_18 = arith.constant 2 : index
    %c0_19 = arith.constant 0 : index
    %c0_20 = arith.constant 0 : index
    %26 = vector.load %arg3[%c2_18, %c0_19, %c0_20] : memref<4x1x128xf32, #tpu.memory_space<vmem>>, vector<1x1x128xf32>
    %27 = vector.shape_cast %26 : vector<1x1x128xf32> to vector<1x128xf32>
    %28 = vector.broadcast %27 : vector<1x128xf32> to vector<8x128xf32>
    %29 = arith.addf %25, %28 : vector<8x128xf32>
    %cst_21 = arith.constant 0.000000e+00 : f32
    %30 = vector.broadcast %cst_21 : f32 to vector<8x128xf32>
    %31 = arith.maximumf %29, %30 : vector<8x128xf32>
    %32 = arith.addf %31, %21 : vector<8x128xf32>
    %33 = arith.truncf %32 : vector<8x128xf32> to vector<8x128xbf16>
    %c3 = arith.constant 3 : index
    %c0_22 = arith.constant 0 : index
    %c0_23 = arith.constant 0 : index
    %34 = vector.load %arg2[%c3, %c0_22, %c0_23] : memref<4x128x128xbf16, #tpu.memory_space<vmem>>, vector<1x128x128xbf16>
    %35 = vector.shape_cast %34 : vector<1x128x128xbf16> to vector<128x128xbf16>
    %cst_24 = arith.constant dense<0.000000e+00> : vector<8x128xf32>
    %36 = tpu.matmul %33, %35, %cst_24 {dimension_numbers = #tpu.dot_dimension_numbers<[1], [0], [0], [1], [0, 0, 1, 1], [], []>} : vector<8x128xbf16>, vector<128x128xbf16>, vector<8x128xf32> -> vector<8x128xf32>
    %c3_25 = arith.constant 3 : index
    %c0_26 = arith.constant 0 : index
    %c0_27 = arith.constant 0 : index
    %37 = vector.load %arg3[%c3_25, %c0_26, %c0_27] : memref<4x1x128xf32, #tpu.memory_space<vmem>>, vector<1x1x128xf32>
    %38 = vector.shape_cast %37 : vector<1x1x128xf32> to vector<1x128xf32>
    %39 = vector.broadcast %38 : vector<1x128xf32> to vector<8x128xf32>
    %40 = arith.addf %36, %39 : vector<8x128xf32>
    %41 = vector.extract_strided_slice %40 {offsets = [0, 0], sizes = [8, 32], strides = [1, 1]} : vector<8x128xf32> to vector<8x32xf32>
    %c0_28 = arith.constant 0 : index
    %c0_29 = arith.constant 0 : index
    %42 = vector.load %arg4[%c0_28, %c0_29] : memref<8x32xf32, #tpu.memory_space<vmem>>, vector<8x32xf32>
    tpu.vector_store %arg4[%c0_28, %c0_29], %41 {strides = array<i32>} : memref<8x32xf32, #tpu.memory_space<vmem>>, vector<8x32xf32>,
    return
  }
  func.func @transform_0(%arg0: i32) -> (i32, i32) {
    %c0_i32 = arith.constant 0 : i32
    %c0_i32_0 = arith.constant 0 : i32
    return %arg0, %c0_i32 : i32, i32
  }
  func.func @transform_1(%arg0: i32) -> (i32, i32, i32) {
    %c0_i32 = arith.constant 0 : i32
    %c0_i32_0 = arith.constant 0 : i32
    %c0_i32_1 = arith.constant 0 : i32
    %c0_i32_2 = arith.constant 0 : i32
    return %c0_i32, %c0_i32_0, %c0_i32_1 : i32, i32, i32
  }
  func.func @transform_2(%arg0: i32) -> (i32, i32, i32) {
    %c0_i32 = arith.constant 0 : i32
    %c0_i32_0 = arith.constant 0 : i32
    %c0_i32_1 = arith.constant 0 : i32
    %c0_i32_2 = arith.constant 0 : i32
    return %c0_i32, %c0_i32_0, %c0_i32_1 : i32, i32, i32
  }
  func.func @transform_3(%arg0: i32) -> (i32, i32) {
    %c0_i32 = arith.constant 0 : i32
    %c0_i32_0 = arith.constant 0 : i32
    return %arg0, %c0_i32 : i32, i32
  }
}

</mosaic_0001>

<llo_original>
// kernel: tpu_custom_call.1
$region0: #{tpu_custom_call.1}
  #allocation0 [shape = 'u32[]', space=smem, size = 0x4, offset = 0x4, fixed_abs, tag = 'smem constant byte address 0x4 - core index']
  #allocation1 [shape = 'u32[144,128]{1,0:T(1,128)}', space=vmem, size = 0x12000, scoped, tag = 'internal scratch']
  %s0 = inlined_call_operand.hbm [shape: f32[8,64], index: 0, kind: input, shape index: {}]
  %s1 = inlined_call_operand.hbm [shape: bf16[4,128,128], index: 1, kind: input, shape index: {}]
  %s2 = inlined_call_operand.hbm [shape: f32[4,1,128], index: 2, kind: input, shape index: {}]
  %s3 = inlined_call_operand.hbm [shape: f32[8,32], index: 3, kind: output, shape index: {}]
  %s4 = sld [smem:[#allocation0]]
  $region34: #{tpu_custom_call.1} parent=0
    _
  %s6 = ssub.s32 1, %s4
  %s7 = scalar_select 0, %s6, %s4
  $region1: #{tpu_custom_call.1} parent=0
    #allocation2 [shape = 'u8[4096]{0}', space=vmem, size = 0x1000, scoped, tag = 'input window, operand 0, single buffered']
    #allocation3 [shape = 's32[1]{0}', space=sflag, size = 0x4, scoped, tag = 'scoped memory for tpu_custom_call.1']
    #allocation4 [shape = 's32[1]{0}', space=sflag, size = 0x4, scoped, tag = 'scoped memory for tpu_custom_call.1']
    #allocation5 [shape = 'u8[131072]{0}', space=vmem, size = 0x20000, scoped, tag = 'input window, operand 1, single buffered']
    #allocation6 [shape = 's32[1]{0}', space=sflag, size = 0x4, scoped, tag = 'scoped memory for tpu_custom_call.1']
    #allocation7 [shape = 'u8[2048]{0}', space=vmem, size = 0x800, scoped, tag = 'input window, operand 2, single buffered']
    #allocation8 [shape = 'u8[4096]{0}', space=vmem, size = 0x1000, scoped, tag = 'output window, operand 0, single buffered']
    %8 = vsyncpa [#allocation3], 0
    %9 = vsyncpa [#allocation6], 0
    %10 = vsyncpa [#allocation4], 0
    // Predicated region
    $region2: #{tpu_custom_call.1} parent=1 // pred_check
      _
    $region3: #{tpu_custom_call.1} parent=1 // pred_check_branch
      %12 = sbr.rel (0) target = $region5
    $region4: #{tpu_custom_call.1} parent=1 // pred_region
      %s14 = ssub.s32 128, 128
      %15 = vsyncadd [#allocation3], %s14
      %s17 = sshll.u32 [#allocation2], 4
      %s18 = int_to_ptr.vmem [resolvable:$true] %s17
      %20 = dma.hbm_to_vmem [thread:$0]  %s0, 128, %s18, [#allocation3]
    $region5: #{tpu_custom_call.1} parent=1 // pred_fallthru
      _
    // Predicated region
    $region6: #{tpu_custom_call.1} parent=1 // pred_check
      _
    $region7: #{tpu_custom_call.1} parent=1 // pred_check_branch
      %22 = sbr.rel (0) target = $region9
    $region8: #{tpu_custom_call.1} parent=1 // pred_region
      %s24 = ssub.s32 4096, 4096
      %25 = vsyncadd [#allocation6], %s24
      %s26 = sshll.u32 [#allocation5], 4
      %s27 = int_to_ptr.vmem [resolvable:$true] %s26
      %32 = dma.hbm_to_vmem [thread:$0]  %s1, 4096, %s27, [#allocation6], 64, 64, 4
    $region9: #{tpu_custom_call.1} parent=1 // pred_fallthru
      _
    // Predicated region
    $region10: #{tpu_custom_call.1} parent=1 // pred_check
      _
    $region11: #{tpu_custom_call.1} parent=1 // pred_check_branch
      %34 = sbr.rel (0) target = $region13
    $region12: #{tpu_custom_call.1} parent=1 // pred_region
      %s36 = ssub.s32 64, 64
      %37 = vsyncadd [#allocation6], %s36
      %s38 = sshll.u32 [#allocation7], 4
      %s39 = int_to_ptr.vmem [resolvable:$true] %s38
      %44 = dma.hbm_to_vmem [thread:$0]  %s2, 64, %s39, [#allocation6], 16, 16, 1
    $region13: #{tpu_custom_call.1} parent=1 // pred_fallthru
      _
    // Predicated region
    $region14: #{tpu_custom_call.1} parent=1 // pred_check
      _
    $region15: #{tpu_custom_call.1} parent=1 // pred_check_branch
      %46 = sbr.rel (0) target = $region17
    $region16: #{tpu_custom_call.1} parent=1 // pred_region
      %47 = dma.done [#allocation3], 128
    $region17: #{tpu_custom_call.1} parent=1 // pred_fallthru
      _
    // Predicated region
    $region18: #{tpu_custom_call.1} parent=1 // pred_check
      _
    $region19: #{tpu_custom_call.1} parent=1 // pred_check_branch
      %49 = sbr.rel (0) target = $region21
    $region20: #{tpu_custom_call.1} parent=1 // pred_region
      %50 = dma.done [#allocation6], 4096
    $region21: #{tpu_custom_call.1} parent=1 // pred_fallthru
      _
    // Predicated region
    $region22: #{tpu_custom_call.1} parent=1 // pred_check
      _
    $region23: #{tpu_custom_call.1} parent=1 // pred_check_branch
      %52 = sbr.rel (0) target = $region25
    $region24: #{tpu_custom_call.1} parent=1 // pred_region
      %53 = dma.done [#allocation6], 64
    $region25: #{tpu_custom_call.1} parent=1 // pred_fallthru
      _
    %v55 = vld [vmem:[#allocation2] sm:$0xff]
    %v56 = vpack.c.bf16 %v55, %v55
    %v57 = vld [vmem:[#allocation5] sm:$0xf]
    %v58 = vld [vmem:[#allocation5 + $0x4] sm:$0xf]
    %v59 = vld [vmem:[#allocation5 + $0x8] sm:$0xf]
    %v60 = vld [vmem:[#allocation5 + $0xc] sm:$0xf]
    %v61 = vld [vmem:[#allocation5 + $0x10] sm:$0xf]
    %v62 = vld [vmem:[#allocation5 + $0x14] sm:$0xf]
    %v63 = vld [vmem:[#allocation5 + $0x18] sm:$0xf]
    %v64 = vld [vmem:[#allocation5 + $0x1c] sm:$0xf]
    %v65 = vld [vmem:[#allocation7] sm:$0x1]
    %v67 = vlaneseq
    %v68 = vshrl.u32 %v67, 7
    %v69 = vsub.s32 0, %v68
    %v70 = vrot.slane %v65, %v69
    %v80 = vunpack.c.l.b16 %v57
    %v81 = vunpack.c.l.b16 %v58
    %v82 = vunpack.c.l.b16 %v59
    %v83 = vunpack.c.l.b16 %v60
    %v84 = vunpack.c.l.b16 %v61
    %v85 = vunpack.c.l.b16 %v62
    %v86 = vunpack.c.l.b16 %v63
    %v87 = vunpack.c.l.b16 %v64
    %v88 = vpack.c.b16 %v81, %v80
    %v89 = vpack.c.b16 %v83, %v82
    %v90 = vpack.c.b16 %v85, %v84
    %v91 = vpack.c.b16 %v87, %v86
    %vm96 = vcmask 523264
    %v98 = vsel %vm96, %v56, 0
    %100 = vmatprep.subr.bf16.mxu0 0
    %101 = vmatpush1.bf16.msra.mxu0 0
    %102 = vmatprep.subr.bf16.mxu0 0
    %103 = vmatpush1.bf16.msra.mxu0 0
    %104 = vmatprep.subr.bf16.mxu0 0
    %105 = vmatpush1.bf16.msra.mxu0 0
    %106 = vmatprep.subr.bf16.mxu0 0
    %107 = vmatpush1.bf16.msra.mxu0 0
    %108 = vmatprep.subr.bf16.mxu0 0
    %109 = vmatpush1.bf16.msra.mxu0 %v91
    %110 = vmatprep.subr.bf16.mxu0 0
    %111 = vmatpush1.bf16.msra.mxu0 %v90
    %112 = vmatprep.subr.bf16.mxu0 0
    %113 = vmatpush1.bf16.msra.mxu0 %v89
    %114 = vmatprep.subr.bf16.mxu0 0
    %115 = vmatpush1.bf16.msra.mxu0 %v88
    %116 = vmatprep.subr.bf16.mxu0 0
    %117 = vmatpush2.bf16.msra.mxu0 0
    %118 = vmatprep.subr.bf16.mxu0 0
    %119 = vmatpush2.bf16.msra.mxu0 0
    %120 = vmatprep.subr.bf16.mxu0 0
    %121 = vmatpush2.bf16.msra.mxu0 0
    %122 = vmatprep.subr.bf16.mxu0 0
    %123 = vmatpush2.bf16.msra.mxu0 0
    %124 = vmatprep.subr.bf16.mxu0 0
    %125 = vmatpush2.bf16.msra.mxu0 0
    %126 = vmatprep.subr.bf16.mxu0 0
    %127 = vmatpush2.bf16.msra.mxu0 0
    %128 = vmatprep.subr.bf16.mxu0 0
    %129 = vmatpush2.bf16.msra.mxu0 0
    %130 = vmatprep.subr.bf16.mxu0 0
    %131 = vmatpush2.bf16.msra.mxu0 0
    %132 = vmatprep.mubr.bf16.mxu0 0
    %133 = vmatmul.mubr.bf16.gmra.mxu0 %v98
    %v134 = vpop.f32.mrf.mxu0
    %v135 = vadd.f32 %v70, %v134
    %v136 = vpop.f32.mrf.mxu0
    %v137 = vpop.f32.mrf.mxu0
    %v138 = vpop.f32.mrf.mxu0
    %139 = vdwg.mxu0
    %v140 = vmax.f32 %v135, 0.0
    %v141 = vpack.c.bf16 %v140, %v140
    %s142 = scalar_lea.vmem [#allocation5], 64
    %v143 = vld [vmem:[%s142] sm:$0xf]
    %v144 = vld [vmem:[%s142 + $0x4] sm:$0xf]
    %v145 = vld [vmem:[%s142 + $0x8] sm:$0xf]
    %v146 = vld [vmem:[%s142 + $0xc] sm:$0xf]
    %v147 = vld [vmem:[%s142 + $0x10] sm:$0xf]
    %v148 = vld [vmem:[%s142 + $0x14] sm:$0xf]
    %v149 = vld [vmem:[%s142 + $0x18] sm:$0xf]
    %v150 = vld [vmem:[%s142 + $0x1c] sm:$0xf]
    %v151 = vld [vmem:[%s142 + $0x20] sm:$0xf]
    %v152 = vld [vmem:[%s142 + $0x24] sm:$0xf]
    %v153 = vld [vmem:[%s142 + $0x28] sm:$0xf]
    %v154 = vld [vmem:[%s142 + $0x2c] sm:$0xf]
    %v155 = vld [vmem:[%s142 + $0x30] sm:$0xf]
    %v156 = vld [vmem:[%s142 + $0x34] sm:$0xf]
    %v157 = vld [vmem:[%s142 + $0x38] sm:$0xf]
    %v158 = vld [vmem:[%s142 + $0x3c] sm:$0xf]
    %s159 = scalar_lea.vmem [#allocation7], 1
    %v160 = vld [vmem:[%s159] sm:$0x1]
    %v162 = vlaneseq
    %v163 = vshrl.u32 %v162, 7
    %v164 = vsub.s32 0, %v163
    %v165 = vrot.slane %v160, %v164
    %v183 = vunpack.c.l.b16 %v143
    %v184 = vunpack.c.l.b16 %v144
    %v185 = vunpack.c.l.b16 %v145
    %v186 = vunpack.c.l.b16 %v146
    %v187 = vunpack.c.l.b16 %v147
    %v188 = vunpack.c.l.b16 %v148
    %v189 = vunpack.c.l.b16 %v149
    %v190 = vunpack.c.l.b16 %v150
    %v191 = vunpack.c.l.b16 %v151
    %v192 = vunpack.c.l.b16 %v152
    %v193 = vunpack.c.l.b16 %v153
    %v194 = vunpack.c.l.b16 %v154
    %v195 = vunpack.c.l.b16 %v155
    %v196 = vunpack.c.l.b16 %v156
    %v197 = vunpack.c.l.b16 %v157
    %v198 = vunpack.c.l.b16 %v158
    %v199 = vpack.c.b16 %v184, %v183
    %v200 = vpack.c.b16 %v186, %v185
    %v201 = vpack.c.b16 %v188, %v187
    %v202 = vpack.c.b16 %v190, %v189
    %v203 = vpack.c.b16 %v192, %v191
    %v204 = vpack.c.b16 %v194, %v193
    %v205 = vpack.c.b16 %v196, %v195
    %v206 = vpack.c.b16 %v198, %v197
    %215 = vmatprep.subr.bf16.mxu0 0
    %216 = vmatpush1.bf16.msra.mxu0 %v206
    %217 = vmatprep.subr.bf16.mxu0 0
    %218 = vmatpush1.bf16.msra.mxu0 %v205
    %219 = vmatprep.subr.bf16.mxu0 0
    %220 = vmatpush1.bf16.msra.mxu0 %v204
    %221 = vmatprep.subr.bf16.mxu0 0
    %222 = vmatpush1.bf16.msra.mxu0 %v203
    %223 = vmatprep.subr.bf16.mxu0 0
    %224 = vmatpush1.bf16.msra.mxu0 %v202
    %225 = vmatprep.subr.bf16.mxu0 0
    %226 = vmatpush1.bf16.msra.mxu0 %v201
    %227 = vmatprep.subr.bf16.mxu0 0
    %228 = vmatpush1.bf16.msra.mxu0 %v200
    %229 = vmatprep.subr.bf16.mxu0 0
    %230 = vmatpush1.bf16.msra.mxu0 %v199
    %231 = vmatprep.subr.bf16.mxu0 0
    %232 = vmatpush2.bf16.msra.mxu0 0
    %233 = vmatprep.subr.bf16.mxu0 0
    %234 = vmatpush2.bf16.msra.mxu0 0
    %235 = vmatprep.subr.bf16.mxu0 0
    %236 = vmatpush2.bf16.msra.mxu0 0
    %237 = vmatprep.subr.bf16.mxu0 0
    %238 = vmatpush2.bf16.msra.mxu0 0
    %239 = vmatprep.subr.bf16.mxu0 0
    %240 = vmatpush2.bf16.msra.mxu0 0
    %241 = vmatprep.subr.bf16.mxu0 0
    %242 = vmatpush2.bf16.msra.mxu0 0
    %243 = vmatprep.subr.bf16.mxu0 0
    %244 = vmatpush2.bf16.msra.mxu0 0
    %245 = vmatprep.subr.bf16.mxu0 0
    %246 = vmatpush2.bf16.msra.mxu0 0
    %247 = vmatprep.mubr.bf16.mxu0 0
    %248 = vmatmul.mubr.bf16.gmra.mxu0 %v141
    %v249 = vpop.f32.mrf.mxu0
    %v250 = vadd.f32 %v165, %v249
    %v251 = vpop.f32.mrf.mxu0
    %v252 = vpop.f32.mrf.mxu0
    %v253 = vpop.f32.mrf.mxu0
    %254 = vdwg.mxu0
    %v255 = vmax.f32 %v250, 0.0
    %v256 = vadd.f32 %v255, %v140
    %v257 = vpack.c.bf16 %v256, %v256
    %s258 = scalar_lea.vmem [#allocation5], 128
    %v259 = vld [vmem:[%s258] sm:$0xf]
    %v260 = vld [vmem:[%s258 + $0x4] sm:$0xf]
    %v261 = vld [vmem:[%s258 + $0x8] sm:$0xf]
    %v262 = vld [vmem:[%s258 + $0xc] sm:$0xf]
    %v263 = vld [vmem:[%s258 + $0x10] sm:$0xf]
    %v264 = vld [vmem:[%s258 + $0x14] sm:$0xf]
    %v265 = vld [vmem:[%s258 + $0x18] sm:$0xf]
    %v266 = vld [vmem:[%s258 + $0x1c] sm:$0xf]
    %v267 = vld [vmem:[%s258 + $0x20] sm:$0xf]
    %v268 = vld [vmem:[%s258 + $0x24] sm:$0xf]
    %v269 = vld [vmem:[%s258 + $0x28] sm:$0xf]
    %v270 = vld [vmem:[%s258 + $0x2c] sm:$0xf]
    %v271 = vld [vmem:[%s258 + $0x30] sm:$0xf]
    %v272 = vld [vmem:[%s258 + $0x34] sm:$0xf]
    %v273 = vld [vmem:[%s258 + $0x38] sm:$0xf]
    %v274 = vld [vmem:[%s258 + $0x3c] sm:$0xf]
    %s275 = scalar_lea.vmem [#allocation7], 2
    %v276 = vld [vmem:[%s275] sm:$0x1]
    %v278 = vlaneseq
    %v279 = vshrl.u32 %v278, 7
    %v280 = vsub.s32 0, %v279
    %v281 = vrot.slane %v276, %v280
    %v299 = vunpack.c.l.b16 %v259
    %v300 = vunpack.c.l.b16 %v260
    %v301 = vunpack.c.l.b16 %v261
    %v302 = vunpack.c.l.b16 %v262
    %v303 = vunpack.c.l.b16 %v263
    %v304 = vunpack.c.l.b16 %v264
    %v305 = vunpack.c.l.b16 %v265
    %v306 = vunpack.c.l.b16 %v266
    %v307 = vunpack.c.l.b16 %v267
    %v308 = vunpack.c.l.b16 %v268
    %v309 = vunpack.c.l.b16 %v269
    %v310 = vunpack.c.l.b16 %v270
    %v311 = vunpack.c.l.b16 %v271
    %v312 = vunpack.c.l.b16 %v272
    %v313 = vunpack.c.l.b16 %v273
    %v314 = vunpack.c.l.b16 %v274
    %v315 = vpack.c.b16 %v300, %v299
    %v316 = vpack.c.b16 %v302, %v301
    %v317 = vpack.c.b16 %v304, %v303
    %v318 = vpack.c.b16 %v306, %v305
    %v319 = vpack.c.b16 %v308, %v307
    %v320 = vpack.c.b16 %v310, %v309
    %v321 = vpack.c.b16 %v312, %v311
    %v322 = vpack.c.b16 %v314, %v313
    %331 = vmatprep.subr.bf16.mxu0 0
    %332 = vmatpush1.bf16.msra.mxu0 %v322
    %333 = vmatprep.subr.bf16.mxu0 0
    %334 = vmatpush1.bf16.msra.mxu0 %v321
    %335 = vmatprep.subr.bf16.mxu0 0
    %336 = vmatpush1.bf16.msra.mxu0 %v320
    %337 = vmatprep.subr.bf16.mxu0 0
    %338 = vmatpush1.bf16.msra.mxu0 %v319
    %339 = vmatprep.subr.bf16.mxu0 0
    %340 = vmatpush1.bf16.msra.mxu0 %v318
    %341 = vmatprep.subr.bf16.mxu0 0
    %342 = vmatpush1.bf16.msra.mxu0 %v317
    %343 = vmatprep.subr.bf16.mxu0 0
    %344 = vmatpush1.bf16.msra.mxu0 %v316
    %345 = vmatprep.subr.bf16.mxu0 0
    %346 = vmatpush1.bf16.msra.mxu0 %v315
    %347 = vmatprep.subr.bf16.mxu0 0
    %348 = vmatpush2.bf16.msra.mxu0 0
    %349 = vmatprep.subr.bf16.mxu0 0
    %350 = vmatpush2.bf16.msra.mxu0 0
    %351 = vmatprep.subr.bf16.mxu0 0
    %352 = vmatpush2.bf16.msra.mxu0 0
    %353 = vmatprep.subr.bf16.mxu0 0
    %354 = vmatpush2.bf16.msra.mxu0 0
    %355 = vmatprep.subr.bf16.mxu0 0
    %356 = vmatpush2.bf16.msra.mxu0 0
    %357 = vmatprep.subr.bf16.mxu0 0
    %358 = vmatpush2.bf16.msra.mxu0 0
    %359 = vmatprep.subr.bf16.mxu0 0
    %360 = vmatpush2.bf16.msra.mxu0 0
    %361 = vmatprep.subr.bf16.mxu0 0
    %362 = vmatpush2.bf16.msra.mxu0 0
    %363 = vmatprep.mubr.bf16.mxu0 0
    %364 = vmatmul.mubr.bf16.gmra.mxu0 %v257
    %v365 = vpop.f32.mrf.mxu0
    %v366 = vadd.f32 %v281, %v365
    %v367 = vpop.f32.mrf.mxu0
    %v368 = vpop.f32.mrf.mxu0
    %v369 = vpop.f32.mrf.mxu0
    %370 = vdwg.mxu0
    %v371 = vmax.f32 %v366, 0.0
    %v372 = vadd.f32 %v371, %v256
    %v373 = vpack.c.bf16 %v372, %v372
    %s374 = scalar_lea.vmem [#allocation5], 192
    %v375 = vld [vmem:[%s374] sm:$0xf]
    %v376 = vld [vmem:[%s374 + $0x4] sm:$0xf]
    %v377 = vld [vmem:[%s374 + $0x8] sm:$0xf]
    %v378 = vld [vmem:[%s374 + $0xc] sm:$0xf]
    %v379 = vld [vmem:[%s374 + $0x10] sm:$0xf]
    %v380 = vld [vmem:[%s374 + $0x14] sm:$0xf]
    %v381 = vld [vmem:[%s374 + $0x18] sm:$0xf]
    %v382 = vld [vmem:[%s374 + $0x1c] sm:$0xf]
    %v383 = vld [vmem:[%s374 + $0x20] sm:$0xf]
    %v384 = vld [vmem:[%s374 + $0x24] sm:$0xf]
    %v385 = vld [vmem:[%s374 + $0x28] sm:$0xf]
    %v386 = vld [vmem:[%s374 + $0x2c] sm:$0xf]
    %v387 = vld [vmem:[%s374 + $0x30] sm:$0xf]
    %v388 = vld [vmem:[%s374 + $0x34] sm:$0xf]
    %v389 = vld [vmem:[%s374 + $0x38] sm:$0xf]
    %v390 = vld [vmem:[%s374 + $0x3c] sm:$0xf]
    %s391 = scalar_lea.vmem [#allocation7], 3
    %v392 = vld [vmem:[%s391] sm:$0x1]
    %v394 = vlaneseq
    %v395 = vshrl.u32 %v394, 7
    %v396 = vsub.s32 0, %v395
    %v397 = vrot.slane %v392, %v396
    %v415 = vunpack.c.l.b16 %v375
    %v416 = vunpack.c.l.b16 %v376
    %v417 = vunpack.c.l.b16 %v377
    %v418 = vunpack.c.l.b16 %v378
    %v419 = vunpack.c.l.b16 %v379
    %v420 = vunpack.c.l.b16 %v380
    %v421 = vunpack.c.l.b16 %v381
    %v422 = vunpack.c.l.b16 %v382
    %v423 = vunpack.c.l.b16 %v383
    %v424 = vunpack.c.l.b16 %v384
    %v425 = vunpack.c.l.b16 %v385
    %v426 = vunpack.c.l.b16 %v386
    %v427 = vunpack.c.l.b16 %v387
    %v428 = vunpack.c.l.b16 %v388
    %v429 = vunpack.c.l.b16 %v389
    %v430 = vunpack.c.l.b16 %v390
    %v431 = vpack.c.b16 %v416, %v415
    %v432 = vpack.c.b16 %v418, %v417
    %v433 = vpack.c.b16 %v420, %v419
    %v434 = vpack.c.b16 %v422, %v421
    %v435 = vpack.c.b16 %v424, %v423
    %v436 = vpack.c.b16 %v426, %v425
    %v437 = vpack.c.b16 %v428, %v427
    %v438 = vpack.c.b16 %v430, %v429
    %447 = vmatprep.subr.bf16.mxu0 0
    %448 = vmatpush1.bf16.msra.mxu0 %v438
    %449 = vmatprep.subr.bf16.mxu0 0
    %450 = vmatpush1.bf16.msra.mxu0 %v437
    %451 = vmatprep.subr.bf16.mxu0 0
    %452 = vmatpush1.bf16.msra.mxu0 %v436
    %453 = vmatprep.subr.bf16.mxu0 0
    %454 = vmatpush1.bf16.msra.mxu0 %v435
    %455 = vmatprep.subr.bf16.mxu0 0
    %456 = vmatpush1.bf16.msra.mxu0 %v434
    %457 = vmatprep.subr.bf16.mxu0 0
    %458 = vmatpush1.bf16.msra.mxu0 %v433
    %459 = vmatprep.subr.bf16.mxu0 0
    %460 = vmatpush1.bf16.msra.mxu0 %v432
    %461 = vmatprep.subr.bf16.mxu0 0
    %462 = vmatpush1.bf16.msra.mxu0 %v431
    %463 = vmatprep.subr.bf16.mxu0 0
    %464 = vmatpush2.bf16.msra.mxu0 0
    %465 = vmatprep.subr.bf16.mxu0 0
    %466 = vmatpush2.bf16.msra.mxu0 0
    %467 = vmatprep.subr.bf16.mxu0 0
    %468 = vmatpush2.bf16.msra.mxu0 0
    %469 = vmatprep.subr.bf16.mxu0 0
    %470 = vmatpush2.bf16.msra.mxu0 0
    %471 = vmatprep.subr.bf16.mxu0 0
    %472 = vmatpush2.bf16.msra.mxu0 0
    %473 = vmatprep.subr.bf16.mxu0 0
    %474 = vmatpush2.bf16.msra.mxu0 0
    %475 = vmatprep.subr.bf16.mxu0 0
    %476 = vmatpush2.bf16.msra.mxu0 0
    %477 = vmatprep.subr.bf16.mxu0 0
    %478 = vmatpush2.bf16.msra.mxu0 0
    %479 = vmatprep.mubr.bf16.mxu0 0
    %480 = vmatmul.mubr.bf16.gmra.mxu0 %v373
    %v481 = vpop.f32.mrf.mxu0
    %v482 = vadd.f32 %v397, %v481
    %v483 = vpop.f32.mrf.mxu0
    %v484 = vpop.f32.mrf.mxu0
    %v485 = vpop.f32.mrf.mxu0
    %486 = vdwg.mxu0
    %vm487 = vcmask 261120
    %488 = vst.msk [vmem:[#allocation8] sm:$0xff] %vm487, %v482
    // Predicated region
    $region26: #{tpu_custom_call.1} parent=1 // pred_check
      _
    $region27: #{tpu_custom_call.1} parent=1 // pred_check_branch
      %490 = sbr.rel (0) target = $region29
    $region28: #{tpu_custom_call.1} parent=1 // pred_region
      %s492 = ssub.s32 128, 128
      %493 = vsyncadd [#allocation4], %s492
      %s495 = sshll.u32 [#allocation8], 4
      %s496 = int_to_ptr.vmem [resolvable:$true] %s495
      %498 = dma.vmem_to_hbm [thread:$0]  %s496, 128, %s3, [#allocation4]
    $region29: #{tpu_custom_call.1} parent=1 // pred_fallthru
      _
    // Predicated region
    $region30: #{tpu_custom_call.1} parent=1 // pred_check
      _
    $region31: #{tpu_custom_call.1} parent=1 // pred_check_branch
      %500 = sbr.rel (0) target = $region33
    $region32: #{tpu_custom_call.1} parent=1 // pred_region
      %501 = dma.done [#allocation4], 128
    $region33: #{tpu_custom_call.1} parent=1 // pred_fallthru
      _
    %502 = vsyncpa [#allocation3], 1
    %503 = vsyncpa [#allocation6], 1
    %504 = vsyncpa [#allocation4], 1

// kernel: tpu_custom_call.1
$region0: #{tpu_custom_call.1}
  #allocation0 [shape = 'u32[]', space=smem, size = 0x4, offset = 0x4, fixed_abs, tag = 'smem constant byte address 0x4 - core index']
  #allocation1 [shape = 'u32[144,128]{1,0:T(1,128)}', space=vmem, size = 0x12000, scoped, tag = 'internal scratch']
  %s0 = inlined_call_operand.hbm [shape: f32[8,64], index: 0, kind: input, shape index: {}]
  %s1 = inlined_call_operand.hbm [shape: bf16[4,128,128], index: 1, kind: input, shape index: {}]
  %s2 = inlined_call_operand.hbm [shape: f32[4,1,128], index: 2, kind: input, shape index: {}]
  %s3 = inlined_call_operand.hbm [shape: f32[8,32], index: 3, kind: output, shape index: {}]
  %s4 = sld [smem:[#allocation0]]
  $region34: #{tpu_custom_call.1} parent=0
    _
  %s6 = ssub.s32 1, %s4
  %s7 = scalar_select 0, %s6, %s4
  $region1: #{tpu_custom_call.1} parent=0
    #allocation2 [shape = 'u8[4096]{0}', space=vmem, size = 0x1000, scoped, tag = 'input window, operand 0, single buffered']
    #allocation3 [shape = 's32[1]{0}', space=sflag, size = 0x4, scoped, tag = 'scoped memory for tpu_custom_call.1']
    #allocation4 [shape = 's32[1]{0}', space=sflag, size = 0x4, scoped, tag = 'scoped memory for tpu_custom_call.1']
    #allocation5 [shape = 'u8[131072]{0}', space=vmem, size = 0x20000, scoped, tag = 'input window, operand 1, single buffered']
    #allocation6 [shape = 's32[1]{0}', space=sflag, size = 0x4, scoped, tag = 'scoped memory for tpu_custom_call.1']
    #allocation7 [shape = 'u8[2048]{0}', space=vmem, size = 0x800, scoped, tag = 'input window, operand 2, single buffered']
    #allocation8 [shape = 'u8[4096]{0}', space=vmem, size = 0x1000, scoped, tag = 'output window, operand 0, single buffered']
    %8 = vsyncpa [#allocation3], 0
    %9 = vsyncpa [#allocation6], 0
    %10 = vsyncpa [#allocation4], 0
    // Predicated region
    $region2: #{tpu_custom_call.1} parent=1 // pred_check
      _
    $region3: #{tpu_custom_call.1} parent=1 // pred_check_branch
      %12 = sbr.rel (0) target = $region5
    $region4: #{tpu_custom_call.1} parent=1 // pred_region
      %s14 = ssub.s32 128, 128
      %15 = vsyncadd [#allocation3], %s14
      %s17 = sshll.u32 [#allocation2], 4
      %s18 = int_to_ptr.vmem [resolvable:$true] %s17
      %20 = dma.hbm_to_vmem [thread:$0]  %s0, 128, %s18, [#allocation3]
    $region5: #{tpu_custom_call.1} parent=1 // pred_fallthru
      _
    // Predicated region
    $region6: #{tpu_custom_call.1} parent=1 // pred_check
      _
    $region7: #{tpu_custom_call.1} parent=1 // pred_check_branch
      %22 = sbr.rel (0) target = $region9
    $region8: #{tpu_custom_call.1} parent=1 // pred_region
      %s24 = ssub.s32 4096, 4096
      %25 = vsyncadd [#allocation6], %s24
      %s26 = sshll.u32 [#allocation5], 4
      %s27 = int_to_ptr.vmem [resolvable:$true] %s26
      %32 = dma.hbm_to_vmem [thread:$0]  %s1, 4096, %s27, [#allocation6], 64, 64, 4
    $region9: #{tpu_custom_call.1} parent=1 // pred_fallthru
      _
    // Predicated region
    $region10: #{tpu_custom_call.1} parent=1 // pred_check
      _
    $region11: #{tpu_custom_call.1} parent=1 // pred_check_branch
      %34 = sbr.rel (0) target = $region13
    $region12: #{tpu_custom_call.1} parent=1 // pred_region
      %s36 = ssub.s32 64, 64
      %37 = vsyncadd [#allocation6], %s36
      %s38 = sshll.u32 [#allocation7], 4
      %s39 = int_to_ptr.vmem [resolvable:$true] %s38
      %44 = dma.hbm_to_vmem [thread:$0]  %s2, 64, %s39, [#allocation6], 16, 16, 1
    $region13: #{tpu_custom_call.1} parent=1 // pred_fallthru
      _
    // Predicated region
    $region14: #{tpu_custom_call.1} parent=1 // pred_check
      _
    $region15: #{tpu_custom_call.1} parent=1 // pred_check_branch
      %46 = sbr.rel (0) target = $region17
    $region16: #{tpu_custom_call.1} parent=1 // pred_region
      %47 = dma.done [#allocation3], 128
    $region17: #{tpu_custom_call.1} parent=1 // pred_fallthru
      _
    // Predicated region
    $region18: #{tpu_custom_call.1} parent=1 // pred_check
      _
    $region19: #{tpu_custom_call.1} parent=1 // pred_check_branch
      %49 = sbr.rel (0) target = $region21
    $region20: #{tpu_custom_call.1} parent=1 // pred_region
      %50 = dma.done [#allocation6], 4096
    $region21: #{tpu_custom_call.1} parent=1 // pred_fallthru
      _
    // Predicated region
    $region22: #{tpu_custom_call.1} parent=1 // pred_check
      _
    $region23: #{tpu_custom_call.1} parent=1 // pred_check_branch
      %52 = sbr.rel (0) target = $region25
    $region24: #{tpu_custom_call.1} parent=1 // pred_region
      %53 = dma.done [#allocation6], 64
    $region25: #{tpu_custom_call.1} parent=1 // pred_fallthru
      _
    %v55 = vld [vmem:[#allocation2] sm:$0xff]
    %v56 = vpack.c.bf16 %v55, %v55
    %v57 = vld [vmem:[#allocation5] sm:$0xf]
    %v58 = vld [vmem:[#allocation5 + $0x4] sm:$0xf]
    %v59 = vld [vmem:[#allocation5 + $0x8] sm:$0xf]
    %v60 = vld [vmem:[#allocation5 + $0xc] sm:$0xf]
    %v61 = vld [vmem:[#allocation5 + $0x10] sm:$0xf]
    %v62 = vld [vmem:[#allocation5 + $0x14] sm:$0xf]
    %v63 = vld [vmem:[#allocation5 + $0x18] sm:$0xf]
    %v64 = vld [vmem:[#allocation5 + $0x1c] sm:$0xf]
    %v65 = vld [vmem:[#allocation7] sm:$0x1]
    %v67 = vlaneseq
    %v68 = vshrl.u32 %v67, 7
    %v69 = vsub.s32 0, %v68
    %v70 = vrot.slane %v65, %v69
    %v80 = vunpack.c.l.b16 %v57
    %v81 = vunpack.c.l.b16 %v58
    %v82 = vunpack.c.l.b16 %v59
    %v83 = vunpack.c.l.b16 %v60
    %v84 = vunpack.c.l.b16 %v61
    %v85 = vunpack.c.l.b16 %v62
    %v86 = vunpack.c.l.b16 %v63
    %v87 = vunpack.c.l.b16 %v64
    %v88 = vpack.c.b16 %v81, %v80
    %v89 = vpack.c.b16 %v83, %v82
    %v90 = vpack.c.b16 %v85, %v84
    %v91 = vpack.c.b16 %v87, %v86
    %vm96 = vcmask 523264
    %v98 = vsel %vm96, %v56, 0
    %100 = vmatprep.subr.bf16.mxu0 0
    %101 = vmatpush1.bf16.msra.mxu0 0
    %102 = vmatprep.subr.bf16.mxu0 0
    %103 = vmatpush1.bf16.msra.mxu0 0
    %104 = vmatprep.subr.bf16.mxu0 0
    %105 = vmatpush1.bf16.msra.mxu0 0
    %106 = vmatprep.subr.bf16.mxu0 0
    %107 = vmatpush1.bf16.msra.mxu0 0
    %108 = vmatprep.subr.bf16.mxu0 0
    %109 = vmatpush1.bf16.msra.mxu0 %v91
    %110 = vmatprep.subr.bf16.mxu0 0
    %111 = vmatpush1.bf16.msra.mxu0 %v90
    %112 = vmatprep.subr.bf16.mxu0 0
    %113 = vmatpush1.bf16.msra.mxu0 %v89
    %114 = vmatprep.subr.bf16.mxu0 0
    %115 = vmatpush1.bf16.msra.mxu0 %v88
    %116 = vmatprep.subr.bf16.mxu0 0
    %117 = vmatpush2.bf16.msra.mxu0 0
    %118 = vmatprep.subr.bf16.mxu0 0
    %119 = vmatpush2.bf16.msra.mxu0 0
    %120 = vmatprep.subr.bf16.mxu0 0
    %121 = vmatpush2.bf16.msra.mxu0 0
    %122 = vmatprep.subr.bf16.mxu0 0
    %123 = vmatpush2.bf16.msra.mxu0 0
    %124 = vmatprep.subr.bf16.mxu0 0
    %125 = vmatpush2.bf16.msra.mxu0 0
    %126 = vmatprep.subr.bf16.mxu0 0
    %127 = vmatpush2.bf16.msra.mxu0 0
    %128 = vmatprep.subr.bf16.mxu0 0
    %129 = vmatpush2.bf16.msra.mxu0 0
    %130 = vmatprep.subr.bf16.mxu0 0
    %131 = vmatpush2.bf16.msra.mxu0 0
    %132 = vmatprep.mubr.bf16.mxu0 0
    %133 = vmatmul.mubr.bf16.gmra.mxu0 %v98
    %v134 = vpop.f32.mrf.mxu0
    %v135 = vadd.f32 %v70, %v134
    %v136 = vpop.f32.mrf.mxu0
    %v137 = vpop.f32.mrf.mxu0
    %v138 = vpop.f32.mrf.mxu0
    %139 = vdwg.mxu0
    %v140 = vmax.f32 %v135, 0.0
    %v141 = vpack.c.bf16 %v140, %v140
    %s142 = scalar_lea.vmem [#allocation5], 64
    %v143 = vld [vmem:[%s142] sm:$0xf]
    %v144 = vld [vmem:[%s142 + $0x4] sm:$0xf]
    %v145 = vld [vmem:[%s142 + $0x8] sm:$0xf]
    %v146 = vld [vmem:[%s142 + $0xc] sm:$0xf]
    %v147 = vld [vmem:[%s142 + $0x10] sm:$0xf]
    %v148 = vld [vmem:[%s142 + $0x14] sm:$0xf]
    %v149 = vld [vmem:[%s142 + $0x18] sm:$0xf]
    %v150 = vld [vmem:[%s142 + $0x1c] sm:$0xf]
    %v151 = vld [vmem:[%s142 + $0x20] sm:$0xf]
    %v152 = vld [vmem:[%s142 + $0x24] sm:$0xf]
    %v153 = vld [vmem:[%s142 + $0x28] sm:$0xf]
    %v154 = vld [vmem:[%s142 + $0x2c] sm:$0xf]
    %v155 = vld [vmem:[%s142 + $0x30] sm:$0xf]
    %v156 = vld [vmem:[%s142 + $0x34] sm:$0xf]
    %v157 = vld [vmem:[%s142 + $0x38] sm:$0xf]
    %v158 = vld [vmem:[%s142 + $0x3c] sm:$0xf]
    %s159 = scalar_lea.vmem [#allocation7], 1
    %v160 = vld [vmem:[%s159] sm:$0x1]
    %v162 = vlaneseq
    %v163 = vshrl.u32 %v162, 7
    %v164 = vsub.s32 0, %v163
    %v165 = vrot.slane %v160, %v164
    %v183 = vunpack.c.l.b16 %v143
    %v184 = vunpack.c.l.b16 %v144
    %v185 = vunpack.c.l.b16 %v145
    %v186 = vunpack.c.l.b16 %v146
    %v187 = vunpack.c.l.b16 %v147
    %v188 = vunpack.c.l.b16 %v148
    %v189 = vunpack.c.l.b16 %v149
    %v190 = vunpack.c.l.b16 %v150
    %v191 = vunpack.c.l.b16 %v151
    %v192 = vunpack.c.l.b16 %v152
    %v193 = vunpack.c.l.b16 %v153
    %v194 = vunpack.c.l.b16 %v154
    %v195 = vunpack.c.l.b16 %v155
    %v196 = vunpack.c.l.b16 %v156
    %v197 = vunpack.c.l.b16 %v157
    %v198 = vunpack.c.l.b16 %v158
    %v199 = vpack.c.b16 %v184, %v183
    %v200 = vpack.c.b16 %v186, %v185
    %v201 = vpack.c.b16 %v188, %v187
    %v202 = vpack.c.b16 %v190, %v189
    %v203 = vpack.c.b16 %v192, %v191
    %v204 = vpack.c.b16 %v194, %v193
    %v205 = vpack.c.b16 %v196, %v195
    %v206 = vpack.c.b16 %v198, %v197
    %215 = vmatprep.subr.bf16.mxu0 0
    %216 = vmatpush1.bf16.msra.mxu0 %v206
    %217 = vmatprep.subr.bf16.mxu0 0
    %218 = vmatpush1.bf16.msra.mxu0 %v205
    %219 = vmatprep.subr.bf16.mxu0 0
    %220 = vmatpush1.bf16.msra.mxu0 %v204
    %221 = vmatprep.subr.bf16.mxu0 0
    %222 = vmatpush1.bf16.msra.mxu0 %v203
    %223 = vmatprep.subr.bf16.mxu0 0
    %224 = vmatpush1.bf16.msra.mxu0 %v202
    %225 = vmatprep.subr.bf16.mxu0 0
    %226 = vmatpush1.bf16.msra.mxu0 %v201
    %227 = vmatprep.subr.bf16.mxu0 0
    %228 = vmatpush1.bf16.msra.mxu0 %v200
    %229 = vmatprep.subr.bf16.mxu0 0
    %230 = vmatpush1.bf16.msra.mxu0 %v199
    %231 = vmatprep.subr.bf16.mxu0 0
    %232 = vmatpush2.bf16.msra.mxu0 0
    %233 = vmatprep.subr.bf16.mxu0 0
    %234 = vmatpush2.bf16.msra.mxu0 0
    %235 = vmatprep.subr.bf16.mxu0 0
    %236 = vmatpush2.bf16.msra.mxu0 0
    %237 = vmatprep.subr.bf16.mxu0 0
    %238 = vmatpush2.bf16.msra.mxu0 0
    %239 = vmatprep.subr.bf16.mxu0 0
    %240 = vmatpush2.bf16.msra.mxu0 0
    %241 = vmatprep.subr.bf16.mxu0 0
    %242 = vmatpush2.bf16.msra.mxu0 0
    %243 = vmatprep.subr.bf16.mxu0 0
    %244 = vmatpush2.bf16.msra.mxu0 0
    %245 = vmatprep.subr.bf16.mxu0 0
    %246 = vmatpush2.bf16.msra.mxu0 0
    %247 = vmatprep.mubr.bf16.mxu0 0
    %248 = vmatmul.mubr.bf16.gmra.mxu0 %v141
    %v249 = vpop.f32.mrf.mxu0
    %v250 = vadd.f32 %v165, %v249
    %v251 = vpop.f32.mrf.mxu0
    %v252 = vpop.f32.mrf.mxu0
    %v253 = vpop.f32.mrf.mxu0
    %254 = vdwg.mxu0
    %v255 = vmax.f32 %v250, 0.0
    %v256 = vadd.f32 %v255, %v140
    %v257 = vpack.c.bf16 %v256, %v256
    %s258 = scalar_lea.vmem [#allocation5], 128
    %v259 = vld [vmem:[%s258] sm:$0xf]
    %v260 = vld [vmem:[%s258 + $0x4] sm:$0xf]
    %v261 = vld [vmem:[%s258 + $0x8] sm:$0xf]
    %v262 = vld [vmem:[%s258 + $0xc] sm:$0xf]
    %v263 = vld [vmem:[%s258 + $0x10] sm:$0xf]
    %v264 = vld [vmem:[%s258 + $0x14] sm:$0xf]
    %v265 = vld [vmem:[%s258 + $0x18] sm:$0xf]
    %v266 = vld [vmem:[%s258 + $0x1c] sm:$0xf]
    %v267 = vld [vmem:[%s258 + $0x20] sm:$0xf]
    %v268 = vld [vmem:[%s258 + $0x24] sm:$0xf]
    %v269 = vld [vmem:[%s258 + $0x28] sm:$0xf]
    %v270 = vld [vmem:[%s258 + $0x2c] sm:$0xf]
    %v271 = vld [vmem:[%s258 + $0x30] sm:$0xf]
    %v272 = vld [vmem:[%s258 + $0x34] sm:$0xf]
    %v273 = vld [vmem:[%s258 + $0x38] sm:$0xf]
    %v274 = vld [vmem:[%s258 + $0x3c] sm:$0xf]
    %s275 = scalar_lea.vmem [#allocation7], 2
    %v276 = vld [vmem:[%s275] sm:$0x1]
    %v278 = vlaneseq
    %v279 = vshrl.u32 %v278, 7
    %v280 = vsub.s32 0, %v279
    %v281 = vrot.slane %v276, %v280
    %v299 = vunpack.c.l.b16 %v259
    %v300 = vunpack.c.l.b16 %v260
    %v301 = vunpack.c.l.b16 %v261
    %v302 = vunpack.c.l.b16 %v262
    %v303 = vunpack.c.l.b16 %v263
    %v304 = vunpack.c.l.b16 %v264
    %v305 = vunpack.c.l.b16 %v265
    %v306 = vunpack.c.l.b16 %v266
    %v307 = vunpack.c.l.b16 %v267
    %v308 = vunpack.c.l.b16 %v268
    %v309 = vunpack.c.l.b16 %v269
    %v310 = vunpack.c.l.b16 %v270
    %v311 = vunpack.c.l.b16 %v271
    %v312 = vunpack.c.l.b16 %v272
    %v313 = vunpack.c.l.b16 %v273
    %v314 = vunpack.c.l.b16 %v274
    %v315 = vpack.c.b16 %v300, %v299
    %v316 = vpack.c.b16 %v302, %v301
    %v317 = vpack.c.b16 %v304, %v303
    %v318 = vpack.c.b16 %v306, %v305
    %v319 = vpack.c.b16 %v308, %v307
    %v320 = vpack.c.b16 %v310, %v309
    %v321 = vpack.c.b16 %v312, %v311
    %v322 = vpack.c.b16 %v314, %v313
    %331 = vmatprep.subr.bf16.mxu0 0
    %332 = vmatpush1.bf16.msra.mxu0 %v322
    %333 = vmatprep.subr.bf16.mxu0 0
    %334 = vmatpush1.bf16.msra.mxu0 %v321
    %335 = vmatprep.subr.bf16.mxu0 0
    %336 = vmatpush1.bf16.msra.mxu0 %v320
    %337 = vmatprep.subr.bf16.mxu0 0
    %338 = vmatpush1.bf16.msra.mxu0 %v319
    %339 = vmatprep.subr.bf16.mxu0 0
    %340 = vmatpush1.bf16.msra.mxu0 %v318
    %341 = vmatprep.subr.bf16.mxu0 0
    %342 = vmatpush1.bf16.msra.mxu0 %v317
    %343 = vmatprep.subr.bf16.mxu0 0
    %344 = vmatpush1.bf16.msra.mxu0 %v316
    %345 = vmatprep.subr.bf16.mxu0 0
    %346 = vmatpush1.bf16.msra.mxu0 %v315
    %347 = vmatprep.subr.bf16.mxu0 0
    %348 = vmatpush2.bf16.msra.mxu0 0
    %349 = vmatprep.subr.bf16.mxu0 0
    %350 = vmatpush2.bf16.msra.mxu0 0
    %351 = vmatprep.subr.bf16.mxu0 0
    %352 = vmatpush2.bf16.msra.mxu0 0
    %353 = vmatprep.subr.bf16.mxu0 0
    %354 = vmatpush2.bf16.msra.mxu0 0
    %355 = vmatprep.subr.bf16.mxu0 0
    %356 = vmatpush2.bf16.msra.mxu0 0
    %357 = vmatprep.subr.bf16.mxu0 0
    %358 = vmatpush2.bf16.msra.mxu0 0
    %359 = vmatprep.subr.bf16.mxu0 0
    %360 = vmatpush2.bf16.msra.mxu0 0
    %361 = vmatprep.subr.bf16.mxu0 0
    %362 = vmatpush2.bf16.msra.mxu0 0
    %363 = vmatprep.mubr.bf16.mxu0 0
    %364 = vmatmul.mubr.bf16.gmra.mxu0 %v257
    %v365 = vpop.f32.mrf.mxu0
    %v366 = vadd.f32 %v281, %v365
    %v367 = vpop.f32.mrf.mxu0
    %v368 = vpop.f32.mrf.mxu0
    %v369 = vpop.f32.mrf.mxu0
    %370 = vdwg.mxu0
    %v371 = vmax.f32 %v366, 0.0
    %v372 = vadd.f32 %v371, %v256
    %v373 = vpack.c.bf16 %v372, %v372
    %s374 = scalar_lea.vmem [#allocation5], 192
    %v375 = vld [vmem:[%s374] sm:$0xf]
    %v376 = vld [vmem:[%s374 + $0x4] sm:$0xf]
    %v377 = vld [vmem:[%s374 + $0x8] sm:$0xf]
    %v378 = vld [vmem:[%s374 + $0xc] sm:$0xf]
    %v379 = vld [vmem:[%s374 + $0x10] sm:$0xf]
    %v380 = vld [vmem:[%s374 + $0x14] sm:$0xf]
    %v381 = vld [vmem:[%s374 + $0x18] sm:$0xf]
    %v382 = vld [vmem:[%s374 + $0x1c] sm:$0xf]
    %v383 = vld [vmem:[%s374 + $0x20] sm:$0xf]
    %v384 = vld [vmem:[%s374 + $0x24] sm:$0xf]
    %v385 = vld [vmem:[%s374 + $0x28] sm:$0xf]
    %v386 = vld [vmem:[%s374 + $0x2c] sm:$0xf]
    %v387 = vld [vmem:[%s374 + $0x30] sm:$0xf]
    %v388 = vld [vmem:[%s374 + $0x34] sm:$0xf]
    %v389 = vld [vmem:[%s374 + $0x38] sm:$0xf]
    %v390 = vld [vmem:[%s374 + $0x3c] sm:$0xf]
    %s391 = scalar_lea.vmem [#allocation7], 3
    %v392 = vld [vmem:[%s391] sm:$0x1]
    %v394 = vlaneseq
    %v395 = vshrl.u32 %v394, 7
    %v396 = vsub.s32 0, %v395
    %v397 = vrot.slane %v392, %v396
    %v415 = vunpack.c.l.b16 %v375
    %v416 = vunpack.c.l.b16 %v376
    %v417 = vunpack.c.l.b16 %v377
    %v418 = vunpack.c.l.b16 %v378
    %v419 = vunpack.c.l.b16 %v379
    %v420 = vunpack.c.l.b16 %v380
    %v421 = vunpack.c.l.b16 %v381
    %v422 = vunpack.c.l.b16 %v382
    %v423 = vunpack.c.l.b16 %v383
    %v424 = vunpack.c.l.b16 %v384
    %v425 = vunpack.c.l.b16 %v385
    %v426 = vunpack.c.l.b16 %v386
    %v427 = vunpack.c.l.b16 %v387
    %v428 = vunpack.c.l.b16 %v388
    %v429 = vunpack.c.l.b16 %v389
    %v430 = vunpack.c.l.b16 %v390
    %v431 = vpack.c.b16 %v416, %v415
    %v432 = vpack.c.b16 %v418, %v417
    %v433 = vpack.c.b16 %v420, %v419
    %v434 = vpack.c.b16 %v422, %v421
    %v435 = vpack.c.b16 %v424, %v423
    %v436 = vpack.c.b16 %v426, %v425
    %v437 = vpack.c.b16 %v428, %v427
    %v438 = vpack.c.b16 %v430, %v429
    %447 = vmatprep.subr.bf16.mxu0 0
    %448 = vmatpush1.bf16.msra.mxu0 %v438
    %449 = vmatprep.subr.bf16.mxu0 0
    %450 = vmatpush1.bf16.msra.mxu0 %v437
    %451 = vmatprep.subr.bf16.mxu0 0
    %452 = vmatpush1.bf16.msra.mxu0 %v436
    %453 = vmatprep.subr.bf16.mxu0 0
    %454 = vmatpush1.bf16.msra.mxu0 %v435
    %455 = vmatprep.subr.bf16.mxu0 0
    %456 = vmatpush1.bf16.msra.mxu0 %v434
    %457 = vmatprep.subr.bf16.mxu0 0
    %458 = vmatpush1.bf16.msra.mxu0 %v433
    %459 = vmatprep.subr.bf16.mxu0 0
    %460 = vmatpush1.bf16.msra.mxu0 %v432
    %461 = vmatprep.subr.bf16.mxu0 0
    %462 = vmatpush1.bf16.msra.mxu0 %v431
    %463 = vmatprep.subr.bf16.mxu0 0
    %464 = vmatpush2.bf16.msra.mxu0 0
    %465 = vmatprep.subr.bf16.mxu0 0
    %466 = vmatpush2.bf16.msra.mxu0 0
    %467 = vmatprep.subr.bf16.mxu0 0
    %468 = vmatpush2.bf16.msra.mxu0 0
    %469 = vmatprep.subr.bf16.mxu0 0
    %470 = vmatpush2.bf16.msra.mxu0 0
    %471 = vmatprep.subr.bf16.mxu0 0
    %472 = vmatpush2.bf16.msra.mxu0 0
    %473 = vmatprep.subr.bf16.mxu0 0
    %474 = vmatpush2.bf16.msra.mxu0 0
    %475 = vmatprep.subr.bf16.mxu0 0
    %476 = vmatpush2.bf16.msra.mxu0 0
    %477 = vmatprep.subr.bf16.mxu0 0
    %478 = vmatpush2.bf16.msra.mxu0 0
    %479 = vmatprep.mubr.bf16.mxu0 0
    %480 = vmatmul.mubr.bf16.gmra.mxu0 %v373
    %v481 = vpop.f32.mrf.mxu0
    %v482 = vadd.f32 %v397, %v481
    %v483 = vpop.f32.mrf.mxu0
    %v484 = vpop.f32.mrf.mxu0
    %v485 = vpop.f32.mrf.mxu0
    %486 = vdwg.mxu0
    %vm487 = vcmask 261120
    %488 = vst.msk [vmem:[#allocation8] sm:$0xff] %vm487, %v482
    // Predicated region
    $region26: #{tpu_custom_call.1} parent=1 // pred_check
      _
    $region27: #{tpu_custom_call.1} parent=1 // pred_check_branch
      %490 = sbr.rel (0) target = $region29
    $region28: #{tpu_custom_call.1} parent=1 // pred_region
      %s492 = ssub.s32 128, 128
      %493 = vsyncadd [#allocation4], %s492
      %s495 = sshll.u32 [#allocation8], 4
      %s496 = int_to_ptr.vmem [resolvable:$true] %s495
      %498 = dma.vmem_to_hbm [thread:$0]  %s496, 128, %s3, [#allocation4]
    $region29: #{tpu_custom_call.1} parent=1 // pred_fallthru
      _
    // Predicated region
    $region30: #{tpu_custom_call.1} parent=1 // pred_check
      _
    $region31: #{tpu_custom_call.1} parent=1 // pred_check_branch
      %500 = sbr.rel (0) target = $region33
    $region32: #{tpu_custom_call.1} parent=1 // pred_region
      %501 = dma.done [#allocation4], 128
    $region33: #{tpu_custom_call.1} parent=1 // pred_fallthru
      _
    %502 = vsyncpa [#allocation3], 1
    %503 = vsyncpa [#allocation6], 1
    %504 = vsyncpa [#allocation4], 1

</llo_original>
